<compile_context>
chip_gen: v7x
topology: tpu7x:2x2x1
jax: 0.10.0
libtpu: 0.0.40
codegen_flags: <defaults>
</compile_context>

<pallas_src>
import functools

import jax
import jax.numpy as jnp
from jax.experimental import pallas as pl
from jax.experimental.pallas import tpu as pltpu


def _round_up(v, m):
    return (v + m - 1) // m * m


def _mlp_kernel(num_hidden, coe_ref, x_ref, *refs):
    """Fused MLP forward for one N-tile.

    coe_ref : SMEM (2,)            -- layer-weight logits (or ones if LW=False)
    x_ref   : VMEM (2, TILE_N, Cin_pad)  f32
    refs    : w_0 .. w_{num_hidden}  (bf16, BN folded into hidden weights, zero padded),
              bias_pack (L_total, F_pad) f32, out_ref (TILE_N, Cout_pad) f32.
    """
    out_ref = refs[-1]
    bias_ref = refs[-2]
    w_refs = refs[:-2]

    # p = softmax(coe, dim=0) -- 2-element softmax with scalar ops (cheap, off critical path).
    c0 = coe_ref[0]
    c1 = coe_ref[1]
    m = jnp.maximum(c0, c1)
    e0 = jnp.exp(c0 - m)
    e1 = jnp.exp(c1 - m)
    inv_s = 1.0 / (e0 + e1)
    p0 = e0 * inv_s
    p1 = e1 * inv_s

    # x @ p : contract the trailing size-2 axis (done once per tile, f32).
    h = x_ref[0] * p0 + x_ref[1] * p1            # [TILE_N, Cin_pad] f32

    bias_all = bias_ref[...]                     # [L_total, F_pad] f32

    for li in range(num_hidden):
        w = w_refs[li][...]                      # bf16 [in_pad, out_pad], BN pre-folded
        h = jnp.dot(h.astype(jnp.bfloat16), w, preferred_element_type=jnp.float32)
        h = h + bias_all[li:li + 1, : w.shape[1]]
        h = jnp.maximum(h, 0.0)                  # ReLU; dropout is identity in eval mode

    # Final Linear (padded logit columns get bias -1e30 -> vanish under log_softmax).
    w = w_refs[num_hidden][...]
    h = jnp.dot(h.astype(jnp.bfloat16), w, preferred_element_type=jnp.float32)
    h = h + bias_all[num_hidden:num_hidden + 1, : w.shape[1]]

    # log_softmax over the last axis
    mx = jnp.max(h, axis=-1, keepdims=True)
    sh = h - mx
    lse = jnp.log(jnp.sum(jnp.exp(sh), axis=-1, keepdims=True))
    out_ref[...] = (sh - lse).astype(out_ref.dtype)


def mlp_forward(x, coe, hidden_params, out_params, *, lw=True, eps=1e-5, block_rows=512):
    """x: [N, in_channels, 2] (PyTorch layout). Returns [N, out_channels] log-probs."""
    n, c_in, two = x.shape
    assert two == 2

    cin_p = _round_up(c_in, 128)

    # ---- Fold BatchNorm (eval) into the Linear weights; zero-pad feature dims to 128. ----
    w_list = []          # bf16 [in_pad, out_pad]
    b_list = []          # f32  [out_pad]
    prev_p = cin_p
    for (w, b, gamma, beta, rmean, rvar) in hidden_params:
        out_dim, in_dim = w.shape
        out_p = _round_up(out_dim, 128)
        scale = gamma.astype(jnp.float32) / jnp.sqrt(rvar.astype(jnp.float32) + eps)
        w_eff = w.T.astype(jnp.float32) * scale[None, :]                    # [in, out]
        b_eff = (b.astype(jnp.float32) - rmean.astype(jnp.float32)) * scale + beta.astype(jnp.float32)
        w_pad = jnp.zeros((prev_p, out_p), jnp.float32).at[:in_dim, :out_dim].set(w_eff)
        b_pad = jnp.zeros((out_p,), jnp.float32).at[:out_dim].set(b_eff)
        w_list.append(w_pad.astype(jnp.bfloat16))
        b_list.append(b_pad)
        prev_p = out_p

    w_out, b_out = out_params
    c_out, in_dim = w_out.shape
    cout_p = _round_up(c_out, 128)
    w_pad = jnp.zeros((prev_p, cout_p), jnp.float32).at[:in_dim, :c_out].set(
        w_out.T.astype(jnp.float32))
    # Pad final bias with a very negative value so padded logits contribute 0 to log_softmax.
    b_pad = jnp.full((cout_p,), -1e30, jnp.float32).at[:c_out].set(b_out.astype(jnp.float32))
    w_list.append(w_pad.astype(jnp.bfloat16))
    b_list.append(b_pad)

    # Pack all biases into one (L_total, F_pad) array -> single resident VMEM ref.
    max_p = max(b.shape[0] for b in b_list)
    bias_pack = jnp.zeros((len(b_list), max_p), jnp.float32)
    for i, b in enumerate(b_list):
        bias_pack = bias_pack.at[i, : b.shape[0]].set(b)

    # ---- Input prep: [N, C, 2] -> [2, N_pad, Cin_pad], N tiled over the grid. ----
    tile_n = min(block_rows, _round_up(n, 8))
    tile_n = _round_up(tile_n, 8)
    n_pad = _round_up(n, tile_n)
    x_k = jnp.transpose(x, (2, 0, 1)).astype(jnp.float32)
    x_k = jnp.pad(x_k, ((0, 0), (0, n_pad - n), (0, cin_p - c_in)))

    coe_in = (coe if lw else jnp.ones_like(coe)).astype(jnp.float32)

    num_hidden = len(hidden_params)
    kernel = functools.partial(_mlp_kernel, num_hidden)

    in_specs = (
        [pl.BlockSpec(memory_space=pltpu.MemorySpace.SMEM)]                    # coe scalars
        + [pl.BlockSpec((2, tile_n, cin_p), lambda i: (0, i, 0))]              # x tile
        + [pl.BlockSpec(w.shape, lambda i: (0, 0)) for w in w_list]            # resident weights
        + [pl.BlockSpec(bias_pack.shape, lambda i: (0, 0))]                    # resident biases
    )

    out = pl.pallas_call(
        kernel,
        out_shape=jax.ShapeDtypeStruct((n_pad, cout_p), jnp.float32),
        grid=(n_pad // tile_n,),
        in_specs=in_specs,
        out_specs=pl.BlockSpec((tile_n, cout_p), lambda i: (i, 0)),
        compiler_params=pltpu.CompilerParams(
            dimension_semantics=("parallel",),      # both TCs on v7x split the N grid
            vmem_limit_bytes=32 * 1024 * 1024,
        ),
    )(coe_in, x_k, *w_list, bias_pack)

    return out[:n, :c_out]


def _reference(x, coe, hidden_params, out_params, *, lw=True, eps=1e-5):
    """Plain-JAX f32 reference mirroring the PyTorch eval-mode forward."""
    c = coe if lw else jnp.ones_like(coe)
    p = jax.nn.softmax(c, axis=0)
    h = x @ p
    for (w, b, gamma, beta, rmean, rvar) in hidden_params:
        h = h @ w.T + b
        h = (h - rmean) / jnp.sqrt(rvar + eps) * gamma + beta
        h = jax.nn.relu(h)
    w_out, b_out = out_params
    h = h @ w_out.T + b_out
    return jax.nn.log_softmax(h, axis=-1)


if __name__ == "__main__":
    # Small shapes consistent with the module: x @ p needs trailing dim 2.
    N, IN_CH, HID, OUT_CH, NUM_LAYERS = 100, 16, 32, 8, 3
    DROPOUT, LW = 0.5, True  # dropout is identity in eval mode

    key = jax.random.PRNGKey(0)
    keys = jax.random.split(key, 32)
    ki = iter(range(32))

    x = jax.random.normal(keys[next(ki)], (N, IN_CH, 2), dtype=jnp.float32)
    coe = jax.random.normal(keys[next(ki)], (2,), dtype=jnp.float32)

    def make_linear(k, fan_in, fan_out):
        k1, k2 = jax.random.split(k)
        bound = 1.0 / jnp.sqrt(fan_in)
        w = jax.random.uniform(k1, (fan_out, fan_in), minval=-bound, maxval=bound)
        b = jax.random.uniform(k2, (fan_out,), minval=-bound, maxval=bound)
        return w.astype(jnp.float32), b.astype(jnp.float32)

    hidden_params = []
    dims = [IN_CH] + [HID] * (NUM_LAYERS - 1)
    for li in range(NUM_LAYERS - 1):
        w, b = make_linear(keys[next(ki)], dims[li], dims[li + 1])
        gamma = 1.0 + 0.1 * jax.random.normal(keys[next(ki)], (dims[li + 1],))
        beta = 0.1 * jax.random.normal(keys[next(ki)], (dims[li + 1],))
        rmean = 0.1 * jax.random.normal(keys[next(ki)], (dims[li + 1],))
        rvar = jax.random.uniform(keys[next(ki)], (dims[li + 1],), minval=0.5, maxval=1.5)
        hidden_params.append((w, b,
                              gamma.astype(jnp.float32), beta.astype(jnp.float32),
                              rmean.astype(jnp.float32), rvar.astype(jnp.float32)))
    out_params = make_linear(keys[next(ki)], HID, OUT_CH)

    # block_rows=32 exercises the N grid (4 tiles) and row padding (100 -> 128).
    out = mlp_forward(x, coe, hidden_params, out_params, lw=LW, block_rows=32)
    out = jax.block_until_ready(out)

    ref = _reference(x, coe, hidden_params, out_params, lw=LW)
    assert out.shape == (N, OUT_CH), out.shape
    # bf16 matmul operands (f32 accumulation) vs a pure-f32 reference -> bf16-level tolerance.
    max_err = float(jnp.max(jnp.abs(out - ref)))
    assert jnp.allclose(out, ref, atol=1e-1, rtol=1e-2), max_err

    print("KERNEL_OK")
</pallas_src>

<mosaic_0001>
module attributes {stable_mosaic.version = 11 : i64} {
  func.func @_mlp_kernel(%arg0: i32, %arg1: memref<2xf32, #tpu.memory_space<smem>>, %arg2: memref<2x32x128xf32, #tpu.memory_space<vmem>>, %arg3: memref<128x128xbf16, #tpu.memory_space<vmem>>, %arg4: memref<128x128xbf16, #tpu.memory_space<vmem>>, %arg5: memref<128x128xbf16, #tpu.memory_space<vmem>>, %arg6: memref<3x128xf32, #tpu.memory_space<vmem>>, %arg7: memref<32x128xf32, #tpu.memory_space<vmem>>) attributes {dimension_semantics = [#tpu.dimension_semantics<parallel>], iteration_bounds = array<i64: 4>, scalar_prefetch = 0 : i64, scratch_operands = 0 : i64, tpu.core_type = #tpu.core_type<tc>, window_params = [{transform_indices = @transform_0, window_bounds = array<i64: 2>}, {transform_indices = @transform_1, window_bounds = array<i64: 2, 32, 128>}, {pipeline_mode = #tpu.pipeline_mode<synchronous>, transform_indices = @transform_2, window_bounds = array<i64: 128, 128>}, {pipeline_mode = #tpu.pipeline_mode<synchronous>, transform_indices = @transform_3, window_bounds = array<i64: 128, 128>}, {pipeline_mode = #tpu.pipeline_mode<synchronous>, transform_indices = @transform_4, window_bounds = array<i64: 128, 128>}, {pipeline_mode = #tpu.pipeline_mode<synchronous>, transform_indices = @transform_5, window_bounds = array<i64: 3, 128>}, {transform_indices = @transform_6, window_bounds = array<i64: 32, 128>}]} {
    %c0 = arith.constant 0 : index
    %0 = memref.load %arg1[%c0] : memref<2xf32, #tpu.memory_space<smem>>
    %c1 = arith.constant 1 : index
    %1 = memref.load %arg1[%c1] : memref<2xf32, #tpu.memory_space<smem>>
    %2 = arith.maximumf %0, %1 : f32
    %3 = arith.subf %0, %2 : f32
    %4 = math.exp %3 : f32
    %5 = arith.subf %1, %2 : f32
    %6 = math.exp %5 : f32
    %7 = arith.addf %4, %6 : f32
    %cst = arith.constant 1.000000e+00 : f32
    %8 = arith.divf %cst, %7 : f32
    %9 = arith.mulf %4, %8 : f32
    %10 = arith.mulf %6, %8 : f32
    %c0_0 = arith.constant 0 : index
    %c0_1 = arith.constant 0 : index
    %c0_2 = arith.constant 0 : index
    %11 = vector.load %arg2[%c0_0, %c0_1, %c0_2] : memref<2x32x128xf32, #tpu.memory_space<vmem>>, vector<1x32x128xf32>
    %12 = vector.shape_cast %11 : vector<1x32x128xf32> to vector<32x128xf32>
    %13 = vector.broadcast %9 : f32 to vector<32x128xf32>
    %14 = arith.mulf %12, %13 : vector<32x128xf32>
    %c1_3 = arith.constant 1 : index
    %c0_4 = arith.constant 0 : index
    %c0_5 = arith.constant 0 : index
    %15 = vector.load %arg2[%c1_3, %c0_4, %c0_5] : memref<2x32x128xf32, #tpu.memory_space<vmem>>, vector<1x32x128xf32>
    %16 = vector.shape_cast %15 : vector<1x32x128xf32> to vector<32x128xf32>
    %17 = vector.broadcast %10 : f32 to vector<32x128xf32>
    %18 = arith.mulf %16, %17 : vector<32x128xf32>
    %19 = arith.addf %14, %18 : vector<32x128xf32>
    %c0_6 = arith.constant 0 : index
    %c0_7 = arith.constant 0 : index
    %20 = vector.load %arg6[%c0_6, %c0_7] : memref<3x128xf32, #tpu.memory_space<vmem>>, vector<3x128xf32>
    %c0_8 = arith.constant 0 : index
    %c0_9 = arith.constant 0 : index
    %21 = vector.load %arg3[%c0_8, %c0_9] : memref<128x128xbf16, #tpu.memory_space<vmem>>, vector<128x128xbf16>
    %22 = arith.truncf %19 : vector<32x128xf32> to vector<32x128xbf16>
    %cst_10 = arith.constant dense<0.000000e+00> : vector<32x128xf32>
    %23 = tpu.matmul %22, %21, %cst_10 {dimension_numbers = #tpu.dot_dimension_numbers<[1], [0], [0], [1], [0, 0, 1, 1], [], []>} : vector<32x128xbf16>, vector<128x128xbf16>, vector<32x128xf32> -> vector<32x128xf32>
    %24 = vector.extract_strided_slice %20 {offsets = [0, 0], sizes = [1, 128], strides = [1, 1]} : vector<3x128xf32> to vector<1x128xf32>
    %25 = vector.broadcast %24 : vector<1x128xf32> to vector<32x128xf32>
    %26 = arith.addf %23, %25 : vector<32x128xf32>
    %cst_11 = arith.constant 0.000000e+00 : f32
    %27 = vector.broadcast %cst_11 : f32 to vector<32x128xf32>
    %28 = arith.maximumf %26, %27 : vector<32x128xf32>
    %c0_12 = arith.constant 0 : index
    %c0_13 = arith.constant 0 : index
    %29 = vector.load %arg4[%c0_12, %c0_13] : memref<128x128xbf16, #tpu.memory_space<vmem>>, vector<128x128xbf16>
    %30 = arith.truncf %28 : vector<32x128xf32> to vector<32x128xbf16>
    %cst_14 = arith.constant dense<0.000000e+00> : vector<32x128xf32>
    %31 = tpu.matmul %30, %29, %cst_14 {dimension_numbers = #tpu.dot_dimension_numbers<[1], [0], [0], [1], [0, 0, 1, 1], [], []>} : vector<32x128xbf16>, vector<128x128xbf16>, vector<32x128xf32> -> vector<32x128xf32>
    %32 = vector.extract_strided_slice %20 {offsets = [1, 0], sizes = [1, 128], strides = [1, 1]} : vector<3x128xf32> to vector<1x128xf32>
    %33 = vector.broadcast %32 : vector<1x128xf32> to vector<32x128xf32>
    %34 = arith.addf %31, %33 : vector<32x128xf32>
    %cst_15 = arith.constant 0.000000e+00 : f32
    %35 = vector.broadcast %cst_15 : f32 to vector<32x128xf32>
    %36 = arith.maximumf %34, %35 : vector<32x128xf32>
    %c0_16 = arith.constant 0 : index
    %c0_17 = arith.constant 0 : index
    %37 = vector.load %arg5[%c0_16, %c0_17] : memref<128x128xbf16, #tpu.memory_space<vmem>>, vector<128x128xbf16>
    %38 = arith.truncf %36 : vector<32x128xf32> to vector<32x128xbf16>
    %cst_18 = arith.constant dense<0.000000e+00> : vector<32x128xf32>
    %39 = tpu.matmul %38, %37, %cst_18 {dimension_numbers = #tpu.dot_dimension_numbers<[1], [0], [0], [1], [0, 0, 1, 1], [], []>} : vector<32x128xbf16>, vector<128x128xbf16>, vector<32x128xf32> -> vector<32x128xf32>
    %40 = vector.extract_strided_slice %20 {offsets = [2, 0], sizes = [1, 128], strides = [1, 1]} : vector<3x128xf32> to vector<1x128xf32>
    %41 = vector.broadcast %40 : vector<1x128xf32> to vector<32x128xf32>
    %42 = arith.addf %39, %41 : vector<32x128xf32>
    %cst_19 = arith.constant dense<0xFF800000> : vector<32xf32>
    %43 = vector.multi_reduction <maximumf>, %42, %cst_19 [1] : vector<32x128xf32> to vector<32xf32>
    %44 = vector.shape_cast %43 : vector<32xf32> to vector<32x1xf32>
    %45 = vector.broadcast %44 : vector<32x1xf32> to vector<32x128xf32>
    %46 = arith.subf %42, %45 : vector<32x128xf32>
    %47 = math.exp %46 : vector<32x128xf32>
    %cst_20 = arith.constant dense<0.000000e+00> : vector<32xf32>
    %48 = vector.multi_reduction <add>, %47, %cst_20 [1] : vector<32x128xf32> to vector<32xf32>
    %49 = vector.shape_cast %48 : vector<32xf32> to vector<32x1xf32>
    %50 = math.log %49 : vector<32x1xf32>
    %51 = vector.broadcast %50 : vector<32x1xf32> to vector<32x128xf32>
    %52 = arith.subf %46, %51 : vector<32x128xf32>
    %c0_21 = arith.constant 0 : index
    %c0_22 = arith.constant 0 : index
    %53 = vector.load %arg7[%c0_21, %c0_22] : memref<32x128xf32, #tpu.memory_space<vmem>>, vector<32x128xf32>
    tpu.vector_store %arg7[%c0_21, %c0_22], %52 {strides = array<i32>} : memref<32x128xf32, #tpu.memory_space<vmem>>, vector<32x128xf32>,
    return
  }
  func.func @transform_0(%arg0: i32) -> i32 {
    %c0_i32 = arith.constant 0 : i32
    %c0_i32_0 = arith.constant 0 : i32
    return %c0_i32 : i32
  }
  func.func @transform_1(%arg0: i32) -> (i32, i32, i32) {
    %c0_i32 = arith.constant 0 : i32
    %c0_i32_0 = arith.constant 0 : i32
    %c0_i32_1 = arith.constant 0 : i32
    return %c0_i32, %arg0, %c0_i32_0 : i32, i32, i32
  }
  func.func @transform_2(%arg0: i32) -> (i32, i32) {
    %c0_i32 = arith.constant 0 : i32
    %c0_i32_0 = arith.constant 0 : i32
    %c0_i32_1 = arith.constant 0 : i32
    return %c0_i32, %c0_i32_0 : i32, i32
  }
  func.func @transform_3(%arg0: i32) -> (i32, i32) {
    %c0_i32 = arith.constant 0 : i32
    %c0_i32_0 = arith.constant 0 : i32
    %c0_i32_1 = arith.constant 0 : i32
    return %c0_i32, %c0_i32_0 : i32, i32
  }
  func.func @transform_4(%arg0: i32) -> (i32, i32) {
    %c0_i32 = arith.constant 0 : i32
    %c0_i32_0 = arith.constant 0 : i32
    %c0_i32_1 = arith.constant 0 : i32
    return %c0_i32, %c0_i32_0 : i32, i32
  }
  func.func @transform_5(%arg0: i32) -> (i32, i32) {
    %c0_i32 = arith.constant 0 : i32
    %c0_i32_0 = arith.constant 0 : i32
    %c0_i32_1 = arith.constant 0 : i32
    return %c0_i32, %c0_i32_0 : i32, i32
  }
  func.func @transform_6(%arg0: i32) -> (i32, i32) {
    %c0_i32 = arith.constant 0 : i32
    %c0_i32_0 = arith.constant 0 : i32
    return %arg0, %c0_i32 : i32, i32
  }
}

</mosaic_0001>

<llo_original>
// kernel: tpu_custom_call.1
$region0: #{tpu_custom_call.1}
  #allocation0 [shape = 'u32[]', space=smem, size = 0x4, offset = 0x4, fixed_abs, tag = 'smem constant byte address 0x4 - core index']
  #allocation1 [shape = 'u32[144,128]{1,0:T(1,128)}', space=vmem, size = 0x12000, scoped, tag = 'internal scratch']
  #allocation13 [shape = 's32[]', space=sflag, size = 0x4, offset = 0, fixed_abs, tag = 'sflag constant byte address 0x0 - dummy sync flag']
  %s0 = inlined_call_operand.hbm [shape: f32[2], index: 0, kind: input, shape index: {}]
  %s1 = inlined_call_operand.hbm [shape: f32[2,128,128], index: 1, kind: input, shape index: {}]
  %s2 = inlined_call_operand.hbm [shape: bf16[128,128], index: 2, kind: input, shape index: {}]
  %s3 = inlined_call_operand.hbm [shape: bf16[128,128], index: 3, kind: input, shape index: {}]
  %s4 = inlined_call_operand.hbm [shape: bf16[128,128], index: 4, kind: input, shape index: {}]
  %s5 = inlined_call_operand.vmem [shape: f32[3,128], index: 5, kind: input, shape index: {}]
  %s6 = inlined_call_operand.hbm [shape: f32[128,128], index: 6, kind: output, shape index: {}]
  %s7 = sld [smem:[#allocation0]]
  $region77: #{tpu_custom_call.1} parent=0
    _
  %s9 = ssub.s32 1, %s7
  %s10 = scalar_select 0, %s9, %s7
  $region1: #{tpu_custom_call.1} parent=0
    #allocation2 [shape = 'u8[512]{0}', space=smem, size = 0x200, scoped, tag = 'input window, operand 0, single buffered']
    #allocation3 [shape = 's32[2]{0}', space=sflag, size = 0x8, scoped, tag = 'scoped memory for tpu_custom_call.1']
    #allocation4 [shape = 's32[2]{0}', space=sflag, size = 0x8, scoped, tag = 'scoped memory for tpu_custom_call.1']
    #allocation5 [shape = 's32[2]{0}', space=sflag, size = 0x8, scoped, tag = 'scoped memory for tpu_custom_call.1']
    #allocation6 [shape = 'u8[65536]{0}', space=vmem, size = 0x10000, scoped, tag = 'input window, operand 1']
    #allocation7 [shape = 'u8[32768]{0}', space=vmem, size = 0x8000, scoped, tag = 'input window, operand 2, single buffered']
    #allocation8 [shape = 's32[1]{0}', space=sflag, size = 0x4, scoped, tag = 'scoped memory for tpu_custom_call.1']
    #allocation9 [shape = 'u8[32768]{0}', space=vmem, size = 0x8000, scoped, tag = 'input window, operand 3, single buffered']
    #allocation10 [shape = 'u8[32768]{0}', space=vmem, size = 0x8000, scoped, tag = 'input window, operand 4, single buffered']
    #allocation11 [shape = 's32[1]{0}', space=sflag, size = 0x4, scoped, tag = 'scoped memory for tpu_custom_call.1']
    #allocation12 [shape = 'u8[32768]{0}', space=vmem, size = 0x8000, scoped, tag = 'output window, operand 0']
    %11 = vsyncpa [#allocation5], 0
    %12 = vsyncpa [#allocation3], 0
    %s13 = scalar_lea.sflag [#allocation3], 1
    %14 = vsyncpa %s13, 0
    %15 = vsyncpa [#allocation8], 0
    %16 = vsyncpa [#allocation11], 0
    %17 = vsyncpa [#allocation4], 0
    %s18 = scalar_lea.sflag [#allocation4], 1
    %19 = vsyncpa %s18, 0
    loop: start=0, step=1, limit=6
    $region2: #{tpu_custom_call.1} parent=1 // loop_pre_header
      _
    $region3: #{tpu_custom_call.1} parent=1 // loop_header
      %s21 = sphi 0, %s25
      %p22 = scmp.ge.s32.totalorder %s21, 6
      %s29 = sphi 0, %s29
      %s31 = sphi 0, %s29
      %s32 = sphi 0, %s31
      %s46 = sphi 0, %s32
      %s52 = sphi 0, %s54
      %s55 = sphi 0, %s52
      %s56 = sphi 0, %s55
      %s72 = sphi 0, %s56
      %s76 = sphi 0, %s76
      %s78 = sphi 0, %s76
      %s79 = sphi 0, %s78
      %s93 = sphi 0, %s79
      %s97 = sphi 0, %s97
      %s99 = sphi 0, %s97
      %s100 = sphi 0, %s99
      %s114 = sphi 0, %s100
      %s118 = sphi 0, %s118
      %s120 = sphi 0, %s118
      %s121 = sphi 0, %s120
      %s135 = sphi 0, %s121
      %s139 = sphi 0, %s139
      %s141 = sphi 0, %s139
      %s142 = sphi 0, %s141
      %s156 = sphi 0, %s142
      %s162 = sphi 0, %s164
      %s165 = sphi 0, %s162
      %s166 = sphi 0, %s165
      %s182 = sphi 0, %s166
    $region4: #{tpu_custom_call.1} parent=1 // loop_header_branch
      %24 = sbr.rel (%p22) target = $region8
    $region5: #{tpu_custom_call.1} parent=1 // loop_body
      %s26 = ssub.s32 %s21, 1
      %s27 = ssub.s32 %s21, 2
      %s28 = sadd.s32 %s21, 1
      %s30 = sadd.s32 %s29, 1
      %p33 = scmp.eq.s32.totalorder %s21, 3
      %p34 = scmp.ne.s32.totalorder %s29, %s31
      %p35 = scmp.eq.s32.totalorder %s21, 0
      %p36 = por %p34, %p35
      %p37 = scmp.ne.s32.totalorder %s29, %s31
      %p38 = scmp.eq.s32.totalorder %s26, 3
      %p39 = por %p37, %p38
      %p40 = scmp.ne.s32.totalorder %s31, %s32
      %p41 = scmp.eq.s32.totalorder %s26, 0
      %p42 = por %p40, %p41
      %p43 = scmp.ne.s32.totalorder %s31, %s32
      %p44 = scmp.eq.s32.totalorder %s27, 3
      %p45 = por %p43, %p44
      %p47 = scmp.ne.s32.totalorder %s32, %s46
      %p48 = scmp.eq.s32.totalorder %s27, 0
      %p49 = por %p47, %p48
      %s50 = ssub.s32 %s21, %s28
      %p51 = scmp.eq.s32.totalorder %s50, 0
      %s53 = sadd.s32 %s52, 1
      %s54 = scalar_select %p51, %s52, %s53
      %p57 = pneg %p51
      %p58 = scmp.eq.s32.totalorder %s21, 3
      %p59 = por %p57, %p58
      %p60 = scmp.ne.s32.totalorder %s52, %s55
      %p61 = scmp.eq.s32.totalorder %s21, 0
      %p62 = por %p60, %p61
      %p63 = scmp.ne.s32.totalorder %s52, %s55
      %p64 = scmp.eq.s32.totalorder %s26, 3
      %p65 = por %p63, %p64
      %p66 = scmp.ne.s32.totalorder %s55, %s56
      %p67 = scmp.eq.s32.totalorder %s26, 0
      %p68 = por %p66, %p67
      %p69 = scmp.ne.s32.totalorder %s55, %s56
      %p70 = scmp.eq.s32.totalorder %s27, 3
      %p71 = por %p69, %p70
      %p73 = scmp.ne.s32.totalorder %s56, %s72
      %p74 = scmp.eq.s32.totalorder %s27, 0
      %p75 = por %p73, %p74
      %s77 = sadd.s32 %s76, 1
      %p80 = scmp.eq.s32.totalorder %s21, 3
      %p81 = scmp.ne.s32.totalorder %s76, %s78
      %p82 = scmp.eq.s32.totalorder %s21, 0
      %p83 = por %p81, %p82
      %p84 = scmp.ne.s32.totalorder %s76, %s78
      %p85 = scmp.eq.s32.totalorder %s26, 3
      %p86 = por %p84, %p85
      %p87 = scmp.ne.s32.totalorder %s78, %s79
      %p88 = scmp.eq.s32.totalorder %s26, 0
      %p89 = por %p87, %p88
      %p90 = scmp.ne.s32.totalorder %s78, %s79
      %p91 = scmp.eq.s32.totalorder %s27, 3
      %p92 = por %p90, %p91
      %p94 = scmp.ne.s32.totalorder %s79, %s93
      %p95 = scmp.eq.s32.totalorder %s27, 0
      %p96 = por %p94, %p95
      %s98 = sadd.s32 %s97, 1
      %p101 = scmp.eq.s32.totalorder %s21, 3
      %p102 = scmp.ne.s32.totalorder %s97, %s99
      %p103 = scmp.eq.s32.totalorder %s21, 0
      %p104 = por %p102, %p103
      %p105 = scmp.ne.s32.totalorder %s97, %s99
      %p106 = scmp.eq.s32.totalorder %s26, 3
      %p107 = por %p105, %p106
      %p108 = scmp.ne.s32.totalorder %s99, %s100
      %p109 = scmp.eq.s32.totalorder %s26, 0
      %p110 = por %p108, %p109
      %p111 = scmp.ne.s32.totalorder %s99, %s100
      %p112 = scmp.eq.s32.totalorder %s27, 3
      %p113 = por %p111, %p112
      %p115 = scmp.ne.s32.totalorder %s100, %s114
      %p116 = scmp.eq.s32.totalorder %s27, 0
      %p117 = por %p115, %p116
      %s119 = sadd.s32 %s118, 1
      %p122 = scmp.eq.s32.totalorder %s21, 3
      %p123 = scmp.ne.s32.totalorder %s118, %s120
      %p124 = scmp.eq.s32.totalorder %s21, 0
      %p125 = por %p123, %p124
      %p126 = scmp.ne.s32.totalorder %s118, %s120
      %p127 = scmp.eq.s32.totalorder %s26, 3
      %p128 = por %p126, %p127
      %p129 = scmp.ne.s32.totalorder %s120, %s121
      %p130 = scmp.eq.s32.totalorder %s26, 0
      %p131 = por %p129, %p130
      %p132 = scmp.ne.s32.totalorder %s120, %s121
      %p133 = scmp.eq.s32.totalorder %s27, 3
      %p134 = por %p132, %p133
      %p136 = scmp.ne.s32.totalorder %s121, %s135
      %p137 = scmp.eq.s32.totalorder %s27, 0
      %p138 = por %p136, %p137
      %s140 = sadd.s32 %s139, 1
      %p143 = scmp.eq.s32.totalorder %s21, 3
      %p144 = scmp.ne.s32.totalorder %s139, %s141
      %p145 = scmp.eq.s32.totalorder %s21, 0
      %p146 = por %p144, %p145
      %p147 = scmp.ne.s32.totalorder %s139, %s141
      %p148 = scmp.eq.s32.totalorder %s26, 3
      %p149 = por %p147, %p148
      %p150 = scmp.ne.s32.totalorder %s141, %s142
      %p151 = scmp.eq.s32.totalorder %s26, 0
      %p152 = por %p150, %p151
      %p153 = scmp.ne.s32.totalorder %s141, %s142
      %p154 = scmp.eq.s32.totalorder %s27, 3
      %p155 = por %p153, %p154
      %p157 = scmp.ne.s32.totalorder %s142, %s156
      %p158 = scmp.eq.s32.totalorder %s27, 0
      %p159 = por %p157, %p158
      %s160 = ssub.s32 %s21, %s28
      %p161 = scmp.eq.s32.totalorder %s160, 0
      %s163 = sadd.s32 %s162, 1
      %s164 = scalar_select %p161, %s162, %s163
      %p167 = pneg %p161
      %p168 = scmp.eq.s32.totalorder %s21, 3
      %p169 = por %p167, %p168
      %p170 = scmp.ne.s32.totalorder %s162, %s165
      %p171 = scmp.eq.s32.totalorder %s21, 0
      %p172 = por %p170, %p171
      %p173 = scmp.ne.s32.totalorder %s162, %s165
      %p174 = scmp.eq.s32.totalorder %s26, 3
      %p175 = por %p173, %p174
      %p176 = scmp.ne.s32.totalorder %s165, %s166
      %p177 = scmp.eq.s32.totalorder %s26, 0
      %p178 = por %p176, %p177
      %p179 = scmp.ne.s32.totalorder %s165, %s166
      %p180 = scmp.eq.s32.totalorder %s27, 3
      %p181 = por %p179, %p180
      %p183 = scmp.ne.s32.totalorder %s166, %s182
      %p184 = scmp.eq.s32.totalorder %s27, 0
      %p185 = por %p183, %p184
      %p186 = scmp.le.s32.totalorder 1, %s21
      %p187 = scmp.lt.s32.totalorder %s21, 5
      %p188 = pnand %p186, %p187
      %p189 = pneg %p188
      // Predicated region
      $region9: #{tpu_custom_call.1} parent=5 // pred_check
        _
      $region10: #{tpu_custom_call.1} parent=5 // pred_check_branch
        %191 = sbr.rel (%p188) target = $region12
      $region11: #{tpu_custom_call.1} parent=5 // pred_region
        %s192 = ssub.s32 %s21, 1
        // Predicated region
        $region13: #{tpu_custom_call.1} parent=11 // pred_check
          %p193 = pneg %p42
        $region14: #{tpu_custom_call.1} parent=11 // pred_check_branch
          %195 = sbr.rel (%p193) target = $region16
        $region15: #{tpu_custom_call.1} parent=11 // pred_region
          %s197 = ssub.s32 16, 16
          %198 = vsyncadd [#allocation5], %s197
          %201 = dma.hbm_to_smem %s0, 16, [#allocation2], [#allocation5]
        $region16: #{tpu_custom_call.1} parent=11 // pred_fallthru
          _
        // Predicated region
        $region17: #{tpu_custom_call.1} parent=11 // pred_check
          %p202 = pneg %p89
        $region18: #{tpu_custom_call.1} parent=11 // pred_check_branch
          %204 = sbr.rel (%p202) target = $region20
        $region19: #{tpu_custom_call.1} parent=11 // pred_region
          %s206 = ssub.s32 1024, 1024
          %207 = vsyncadd [#allocation8], %s206
          %s208 = sshll.u32 [#allocation7], 4
          %s209 = int_to_ptr.vmem [resolvable:$true] %s208
          %214 = dma.hbm_to_vmem [thread:$0]  %s2, 1024, %s209, [#allocation8], 64, 64, 4
        $region20: #{tpu_custom_call.1} parent=11 // pred_fallthru
          _
        // Predicated region
        $region21: #{tpu_custom_call.1} parent=11 // pred_check
          %p215 = pneg %p110
        $region22: #{tpu_custom_call.1} parent=11 // pred_check_branch
          %217 = sbr.rel (%p215) target = $region24
        $region23: #{tpu_custom_call.1} parent=11 // pred_region
          %s219 = ssub.s32 1024, 1024
          %220 = vsyncadd [#allocation8], %s219
          %s221 = sshll.u32 [#allocation9], 4
          %s222 = int_to_ptr.vmem [resolvable:$true] %s221
          %227 = dma.hbm_to_vmem [thread:$0]  %s3, 1024, %s222, [#allocation8], 64, 64, 4
        $region24: #{tpu_custom_call.1} parent=11 // pred_fallthru
          _
        // Predicated region
        $region25: #{tpu_custom_call.1} parent=11 // pred_check
          %p228 = pneg %p131
        $region26: #{tpu_custom_call.1} parent=11 // pred_check_branch
          %230 = sbr.rel (%p228) target = $region28
        $region27: #{tpu_custom_call.1} parent=11 // pred_region
          %s232 = ssub.s32 1024, 1024
          %233 = vsyncadd [#allocation11], %s232
          %s234 = sshll.u32 [#allocation10], 4
          %s235 = int_to_ptr.vmem [resolvable:$true] %s234
          %240 = dma.hbm_to_vmem [thread:$0]  %s4, 1024, %s235, [#allocation11], 64, 64, 4
        $region28: #{tpu_custom_call.1} parent=11 // pred_fallthru
          _
        // Predicated region
        $region29: #{tpu_custom_call.1} parent=11 // pred_check
          %p241 = pneg %p152
        $region30: #{tpu_custom_call.1} parent=11 // pred_check_branch
          %243 = sbr.rel (%p241) target = $region32
        $region31: #{tpu_custom_call.1} parent=11 // pred_region
          _
        $region32: #{tpu_custom_call.1} parent=11 // pred_fallthru
          _
      $region12: #{tpu_custom_call.1} parent=5 // pred_fallthru
        _
      %p244 = scmp.lt.s32.totalorder %s21, 4
      // Predicated region
      $region33: #{tpu_custom_call.1} parent=5 // pred_check
        %p245 = pneg %p244
      $region34: #{tpu_custom_call.1} parent=5 // pred_check_branch
        %247 = sbr.rel (%p245) target = $region36
      $region35: #{tpu_custom_call.1} parent=5 // pred_region
        // Predicated region
        $region37: #{tpu_custom_call.1} parent=35 // pred_check
          %p248 = pneg %p62
        $region38: #{tpu_custom_call.1} parent=35 // pred_check_branch
          %250 = sbr.rel (%p248) target = $region40
        $region39: #{tpu_custom_call.1} parent=35 // pred_region
          #allocation14 [shape = 'u32[6]{0}', space=smem, size = 0x18, scoped, tag = 'DMA stride descriptor']
          %s251 = sand.u32 %s52, 1
          %s252 = scalar_lea.sflag [#allocation3], %s251
          %s253 = sand.u32 %s52, 1
          %s254 = smul.addr %s253, 64
          %s255 = scalar_lea.vmem [#allocation6], %s254
          %s256 = smul.u32 4, %s21
          %s258 = ssub.s32 1024, 1024
          %259 = vsyncadd %s252, %s258
          %s260 = smul.addr %s256, 128
          %s261 = scalar_lea.hbm %s1, %s260
          %s263 = sshll.u32 1, 14
          %s264 = sxor.u32 4294967295, %s263
          %s266 = sld [smem:[#allocation0]]
          %s267 = sadd.s32 2, %s266
          %s269 = sshll.u32 7, 26
          %s270 = sxor.u32 4294967295, %s269
          %s271 = sand.u32 0, %s270
          %s272 = sshll.u32 %s267, 26
          %s273 = sor.u32 %s271, %s272
          %s274 = sshll.u32 %s255, 4
          %s275 = int_to_ptr.vmem [resolvable:$true] %s274
          %281 = sst [smem:[#allocation14]] 2048
          %s282 = scalar_lea.smem [#allocation14], 1
          %283 = sst [smem:[%s282]] 512
          %s284 = scalar_lea.smem [#allocation14], 2
          %285 = sst [smem:[%s284]] 4
          %s286 = scalar_lea.smem [#allocation14], 3
          %287 = sst [smem:[%s286]] 128
          %s288 = scalar_lea.smem [#allocation14], 4
          %289 = sst [smem:[%s288]] 128
          %s290 = scalar_lea.smem [#allocation14], 5
          %291 = sst [smem:[%s290]] 8
          %293 = dma.general %s261, 1024, %s275, %s252, [#allocation13], [#allocation14], %s273, 0
        $region40: #{tpu_custom_call.1} parent=35 // pred_fallthru
          _
      $region36: #{tpu_custom_call.1} parent=5 // pred_fallthru
        _
      %p294 = scmp.le.s32.totalorder 1, %s21
      %p295 = scmp.lt.s32.totalorder %s21, 5
      %p296 = pnand %p294, %p295
      %p297 = pneg %p296
      // Predicated region
      $region41: #{tpu_custom_call.1} parent=5 // pred_check
        _
      $region42: #{tpu_custom_call.1} parent=5 // pred_check_branch
        %299 = sbr.rel (%p296) target = $region44
      $region43: #{tpu_custom_call.1} parent=5 // pred_region
        %s300 = ssub.s32 %s21, 1
        // Predicated region
        $region45: #{tpu_custom_call.1} parent=43 // pred_check
          %p301 = pneg %p42
        $region46: #{tpu_custom_call.1} parent=43 // pred_check_branch
          %303 = sbr.rel (%p301) target = $region48
        $region47: #{tpu_custom_call.1} parent=43 // pred_region
          %304 = dma.done [#allocation5], 16
        $region48: #{tpu_custom_call.1} parent=43 // pred_fallthru
          _
        %s305 = sand.u32 %s55, 1
        %s306 = scalar_lea.sflag [#allocation3], %s305
        %s307 = sand.u32 %s55, 1
        %s308 = smul.addr %s307, 64
        %s309 = scalar_lea.vmem [#allocation6], %s308
        // Predicated region
        $region49: #{tpu_custom_call.1} parent=43 // pred_check
          %p310 = pneg %p68
        $region50: #{tpu_custom_call.1} parent=43 // pred_check_branch
          %312 = sbr.rel (%p310) target = $region52
        $region51: #{tpu_custom_call.1} parent=43 // pred_region
          %313 = dma.done %s306, 1024
        $region52: #{tpu_custom_call.1} parent=43 // pred_fallthru
          _
        // Predicated region
        $region53: #{tpu_custom_call.1} parent=43 // pred_check
          %p314 = pneg %p89
        $region54: #{tpu_custom_call.1} parent=43 // pred_check_branch
          %316 = sbr.rel (%p314) target = $region56
        $region55: #{tpu_custom_call.1} parent=43 // pred_region
          %317 = dma.done [#allocation8], 1024
        $region56: #{tpu_custom_call.1} parent=43 // pred_fallthru
          _
        // Predicated region
        $region57: #{tpu_custom_call.1} parent=43 // pred_check
          %p318 = pneg %p110
        $region58: #{tpu_custom_call.1} parent=43 // pred_check_branch
          %320 = sbr.rel (%p318) target = $region60
        $region59: #{tpu_custom_call.1} parent=43 // pred_region
          %321 = dma.done [#allocation8], 1024
        $region60: #{tpu_custom_call.1} parent=43 // pred_fallthru
          _
        // Predicated region
        $region61: #{tpu_custom_call.1} parent=43 // pred_check
          %p322 = pneg %p131
        $region62: #{tpu_custom_call.1} parent=43 // pred_check_branch
          %324 = sbr.rel (%p322) target = $region64
        $region63: #{tpu_custom_call.1} parent=43 // pred_region
          %325 = dma.done [#allocation11], 1024
        $region64: #{tpu_custom_call.1} parent=43 // pred_fallthru
          _
        %326 = sfence
        %p327 = pneg %p42
        %p328 = pneg %p39
        %s329 = sand.u32 %s55, 1
        %s330 = scalar_lea.sflag [#allocation3], %s329
        %s331 = sand.u32 %s55, 1
        %s332 = smul.addr %s331, 64
        %s333 = scalar_lea.vmem [#allocation6], %s332
        %p334 = pneg %p68
        %p335 = pneg %p65
        %p336 = pneg %p89
        %p337 = pneg %p86
        %p338 = pneg %p110
        %p339 = pneg %p107
        %p340 = pneg %p131
        %p341 = pneg %p128
        %p342 = pneg %p152
        %p343 = pneg %p149
        %p344 = pneg %p178
        %p345 = pneg %p175
        %s346 = sand.u32 %s165, 1
        %s347 = scalar_lea.sflag [#allocation4], %s346
        %s348 = sand.u32 %s165, 1
        %s349 = smul.addr %s348, 32
        %s350 = scalar_lea.vmem [#allocation12], %s349
        %s351 = smul.u32 4, %s26
        %s352 = smul.u32 4, %s26
        %s354 = sld [smem:[#allocation2]]
        %s355 = sld [smem:[#allocation2 + $0x1]]
        %s356 = smax.f32 %s354, %s355
        %s357 = ssub.f32 %s354, %s356
        %v358 = vstv %s357
        %v359 = vmul.f32 %v358, 1.442695
        %v360 = vpow.pop %v359
        %s361 = vtos %v360
        %s362 = ssub.f32 %s355, %s356
        %v363 = vstv %s362
        %v364 = vmul.f32 %v363, 1.442695
        %v365 = vpow.pop %v364
        %s366 = vtos %v365
        %s367 = sadd.f32 %s361, %s366
        %v368 = vstv %s367
        %v369 = vrcp.pop %v368
        %s370 = vtos %v369
        %s371 = smul.f32 %s361, %s370
        %s372 = smul.f32 %s366, %s370
        %v373 = vld [vmem:[%s309] sm:$0xff]
        %v374 = vld [vmem:[%s309 + $0x8] sm:$0xff]
        %v375 = vld [vmem:[%s309 + $0x10] sm:$0xff]
        %v376 = vld [vmem:[%s309 + $0x18] sm:$0xff]
        %v377 = vstv %s371
        %v378 = vmul.f32 %v373, %v377
        %v379 = vmul.f32 %v374, %v377
        %v380 = vmul.f32 %v375, %v377
        %v381 = vmul.f32 %v376, %v377
        %s382 = scalar_lea.vmem %s309, 32 [#allocation6]
        %v383 = vld [vmem:[%s382] sm:$0xff]
        %v384 = vld [vmem:[%s382 + $0x8] sm:$0xff]
        %v385 = vld [vmem:[%s382 + $0x10] sm:$0xff]
        %v386 = vld [vmem:[%s382 + $0x18] sm:$0xff]
        %v387 = vstv %s372
        %v388 = vmul.f32 %v383, %v387
        %v389 = vmul.f32 %v384, %v387
        %v390 = vmul.f32 %v385, %v387
        %v391 = vmul.f32 %v386, %v387
        %v392 = vadd.f32 %v378, %v388
        %v393 = vadd.f32 %v379, %v389
        %v394 = vadd.f32 %v380, %v390
        %v395 = vadd.f32 %v381, %v391
        %v396 = vld [vmem:[%s5] sm:$0x7]
        %v397 = vld [vmem:[#allocation7] sm:$0xf]
        %v398 = vld [vmem:[#allocation7 + $0x4] sm:$0xf]
        %v399 = vld [vmem:[#allocation7 + $0x8] sm:$0xf]
        %v400 = vld [vmem:[#allocation7 + $0xc] sm:$0xf]
        %v401 = vld [vmem:[#allocation7 + $0x10] sm:$0xf]
        %v402 = vld [vmem:[#allocation7 + $0x14] sm:$0xf]
        %v403 = vld [vmem:[#allocation7 + $0x18] sm:$0xf]
        %v404 = vld [vmem:[#allocation7 + $0x1c] sm:$0xf]
        %v405 = vld [vmem:[#allocation7 + $0x20] sm:$0xf]
        %v406 = vld [vmem:[#allocation7 + $0x24] sm:$0xf]
        %v407 = vld [vmem:[#allocation7 + $0x28] sm:$0xf]
        %v408 = vld [vmem:[#allocation7 + $0x2c] sm:$0xf]
        %v409 = vld [vmem:[#allocation7 + $0x30] sm:$0xf]
        %v410 = vld [vmem:[#allocation7 + $0x34] sm:$0xf]
        %v411 = vld [vmem:[#allocation7 + $0x38] sm:$0xf]
        %v412 = vld [vmem:[#allocation7 + $0x3c] sm:$0xf]
        %v413 = vpack.c.bf16 %v393, %v392
        %v414 = vpack.c.bf16 %v395, %v394
        %v415 = vlaneseq
        %v416 = vshrl.u32 %v415, 7
        %v417 = vsub.s32 0, %v416
        %v418 = vrot.slane %v396, %v417
        %v435 = vunpack.c.l.b16 %v397
        %v436 = vunpack.c.l.b16 %v398
        %v437 = vunpack.c.l.b16 %v399
        %v438 = vunpack.c.l.b16 %v400
        %v439 = vunpack.c.l.b16 %v401
        %v440 = vunpack.c.l.b16 %v402
        %v441 = vunpack.c.l.b16 %v403
        %v442 = vunpack.c.l.b16 %v404
        %v443 = vunpack.c.l.b16 %v405
        %v444 = vunpack.c.l.b16 %v406
        %v445 = vunpack.c.l.b16 %v407
        %v446 = vunpack.c.l.b16 %v408
        %v447 = vunpack.c.l.b16 %v409
        %v448 = vunpack.c.l.b16 %v410
        %v449 = vunpack.c.l.b16 %v411
        %v450 = vunpack.c.l.b16 %v412
        %v451 = vpack.c.b16 %v436, %v435
        %v452 = vpack.c.b16 %v438, %v437
        %v453 = vpack.c.b16 %v440, %v439
        %v454 = vpack.c.b16 %v442, %v441
        %v455 = vpack.c.b16 %v444, %v443
        %v456 = vpack.c.b16 %v446, %v445
        %v457 = vpack.c.b16 %v448, %v447
        %v458 = vpack.c.b16 %v450, %v449
        %467 = vmatprep.subr.bf16.mxu0 0
        %468 = vmatpush1.bf16.msra.mxu0 %v451
        %469 = vmatprep.subr.bf16.mxu0 0
        %470 = vmatpush1.bf16.msra.mxu0 %v452
        %471 = vmatprep.subr.bf16.mxu0 0
        %472 = vmatpush1.bf16.msra.mxu0 %v453
        %473 = vmatprep.subr.bf16.mxu0 0
        %474 = vmatpush1.bf16.msra.mxu0 %v454
        %475 = vmatprep.subr.bf16.mxu0 0
        %476 = vmatpush1.bf16.msra.mxu0 %v455
        %477 = vmatprep.subr.bf16.mxu0 0
        %478 = vmatpush1.bf16.msra.mxu0 %v456
        %479 = vmatprep.subr.bf16.mxu0 0
        %480 = vmatpush1.bf16.msra.mxu0 %v457
        %481 = vmatprep.subr.bf16.mxu0 0
        %482 = vmatpush1.bf16.msra.mxu0 %v458
        %483 = vmatprep.subr.bf16.mxu0 0
        %484 = vmatpush1.bf16.msra.mxu0 0
        %485 = vmatprep.subr.bf16.mxu0 0
        %486 = vmatpush1.bf16.msra.mxu0 0
        %487 = vmatprep.subr.bf16.mxu0 0
        %488 = vmatpush1.bf16.msra.mxu0 0
        %489 = vmatprep.subr.bf16.mxu0 0
        %490 = vmatpush1.bf16.msra.mxu0 0
        %491 = vmatprep.subr.bf16.mxu0 0
        %492 = vmatpush1.bf16.msra.mxu0 0
        %493 = vmatprep.subr.bf16.mxu0 0
        %494 = vmatpush1.bf16.msra.mxu0 0
        %495 = vmatprep.subr.bf16.mxu0 0
        %496 = vmatpush1.bf16.msra.mxu0 0
        %497 = vmatprep.subr.bf16.mxu0 0
        %498 = vmatpush1.bf16.msra.mxu0 0
        %499 = vmatprep.mubr.bf16.mxu0 0
        %500 = vmatmul.mubr.bf16.gmra.mrb[0].mxu0 %v413
        %v501 = vpop.f32.mrb[0].mxu0
        %v502 = vadd.f32 %v418, %v501
        %v503 = vpop.f32.mrb[0].mxu0
        %v504 = vpop.f32.mrb[0].mxu0
        %v505 = vadd.f32 %v418, %v504
        %v506 = vpop.f32.mrb[0].mxu0
        %507 = vmatprep.mubr.bf16.mxu0 0
        %508 = vmatmul.mubr.bf16.gmra.mrb[0].mxu0 %v414
        %v509 = vpop.f32.mrb[0].mxu0
        %v510 = vadd.f32 %v418, %v509
        %v511 = vpop.f32.mrb[0].mxu0
        %v512 = vpop.f32.mrb[0].mxu0
        %v513 = vadd.f32 %v418, %v512
        %v514 = vpop.f32.mrb[0].mxu0
        %515 = vdwg.mxu0
        %v516 = vmax.f32 %v502, 0.0
        %v517 = vmax.f32 %v505, 0.0
        %v518 = vmax.f32 %v510, 0.0
        %v519 = vmax.f32 %v513, 0.0
        %v520 = vld [vmem:[#allocation9] sm:$0xf]
        %v521 = vld [vmem:[#allocation9 + $0x4] sm:$0xf]
        %v522 = vld [vmem:[#allocation9 + $0x8] sm:$0xf]
        %v523 = vld [vmem:[#allocation9 + $0xc] sm:$0xf]
        %v524 = vld [vmem:[#allocation9 + $0x10] sm:$0xf]
        %v525 = vld [vmem:[#allocation9 + $0x14] sm:$0xf]
        %v526 = vld [vmem:[#allocation9 + $0x18] sm:$0xf]
        %v527 = vld [vmem:[#allocation9 + $0x1c] sm:$0xf]
        %v528 = vld [vmem:[#allocation9 + $0x20] sm:$0xf]
        %v529 = vld [vmem:[#allocation9 + $0x24] sm:$0xf]
        %v530 = vld [vmem:[#allocation9 + $0x28] sm:$0xf]
        %v531 = vld [vmem:[#allocation9 + $0x2c] sm:$0xf]
        %v532 = vld [vmem:[#allocation9 + $0x30] sm:$0xf]
        %v533 = vld [vmem:[#allocation9 + $0x34] sm:$0xf]
        %v534 = vld [vmem:[#allocation9 + $0x38] sm:$0xf]
        %v535 = vld [vmem:[#allocation9 + $0x3c] sm:$0xf]
        %v536 = vpack.c.bf16 %v517, %v516
        %v537 = vpack.c.bf16 %v519, %v518
        %v538 = vlaneseq
        %v539 = vshrl.u32 %v538, 7
        %v540 = vsub.s32 1, %v539
        %v541 = vrot.slane %v396, %v540
        %v558 = vunpack.c.l.b16 %v520
        %v559 = vunpack.c.l.b16 %v521
        %v560 = vunpack.c.l.b16 %v522
        %v561 = vunpack.c.l.b16 %v523
        %v562 = vunpack.c.l.b16 %v524
        %v563 = vunpack.c.l.b16 %v525
        %v564 = vunpack.c.l.b16 %v526
        %v565 = vunpack.c.l.b16 %v527
        %v566 = vunpack.c.l.b16 %v528
        %v567 = vunpack.c.l.b16 %v529
        %v568 = vunpack.c.l.b16 %v530
        %v569 = vunpack.c.l.b16 %v531
        %v570 = vunpack.c.l.b16 %v532
        %v571 = vunpack.c.l.b16 %v533
        %v572 = vunpack.c.l.b16 %v534
        %v573 = vunpack.c.l.b16 %v535
        %v574 = vpack.c.b16 %v559, %v558
        %v575 = vpack.c.b16 %v561, %v560
        %v576 = vpack.c.b16 %v563, %v562
        %v577 = vpack.c.b16 %v565, %v564
        %v578 = vpack.c.b16 %v567, %v566
        %v579 = vpack.c.b16 %v569, %v568
        %v580 = vpack.c.b16 %v571, %v570
        %v581 = vpack.c.b16 %v573, %v572
        %590 = vmatprep.subr.bf16.mxu0 0
        %591 = vmatpush1.bf16.msra.mxu0 %v574
        %592 = vmatprep.subr.bf16.mxu0 0
        %593 = vmatpush1.bf16.msra.mxu0 %v575
        %594 = vmatprep.subr.bf16.mxu0 0
        %595 = vmatpush1.bf16.msra.mxu0 %v576
        %596 = vmatprep.subr.bf16.mxu0 0
        %597 = vmatpush1.bf16.msra.mxu0 %v577
        %598 = vmatprep.subr.bf16.mxu0 0
        %599 = vmatpush1.bf16.msra.mxu0 %v578
        %600 = vmatprep.subr.bf16.mxu0 0
        %601 = vmatpush1.bf16.msra.mxu0 %v579
        %602 = vmatprep.subr.bf16.mxu0 0
        %603 = vmatpush1.bf16.msra.mxu0 %v580
        %604 = vmatprep.subr.bf16.mxu0 0
        %605 = vmatpush1.bf16.msra.mxu0 %v581
        %606 = vmatprep.subr.bf16.mxu0 0
        %607 = vmatpush1.bf16.msra.mxu0 0
        %608 = vmatprep.subr.bf16.mxu0 0
        %609 = vmatpush1.bf16.msra.mxu0 0
        %610 = vmatprep.subr.bf16.mxu0 0
        %611 = vmatpush1.bf16.msra.mxu0 0
        %612 = vmatprep.subr.bf16.mxu0 0
        %613 = vmatpush1.bf16.msra.mxu0 0
        %614 = vmatprep.subr.bf16.mxu0 0
        %615 = vmatpush1.bf16.msra.mxu0 0
        %616 = vmatprep.subr.bf16.mxu0 0
        %617 = vmatpush1.bf16.msra.mxu0 0
        %618 = vmatprep.subr.bf16.mxu0 0
        %619 = vmatpush1.bf16.msra.mxu0 0
        %620 = vmatprep.subr.bf16.mxu0 0
        %621 = vmatpush1.bf16.msra.mxu0 0
        %622 = vmatprep.mubr.bf16.mxu0 0
        %623 = vmatmul.mubr.bf16.gmra.mrb[0].mxu0 %v536
        %v624 = vpop.f32.mrb[0].mxu0
        %v625 = vadd.f32 %v541, %v624
        %v626 = vpop.f32.mrb[0].mxu0
        %v627 = vpop.f32.mrb[0].mxu0
        %v628 = vadd.f32 %v541, %v627
        %v629 = vpop.f32.mrb[0].mxu0
        %630 = vmatprep.mubr.bf16.mxu0 0
        %631 = vmatmul.mubr.bf16.gmra.mrb[0].mxu0 %v537
        %v632 = vpop.f32.mrb[0].mxu0
        %v633 = vadd.f32 %v541, %v632
        %v634 = vpop.f32.mrb[0].mxu0
        %v635 = vpop.f32.mrb[0].mxu0
        %v636 = vadd.f32 %v541, %v635
        %v637 = vpop.f32.mrb[0].mxu0
        %638 = vdwg.mxu0
        %v639 = vmax.f32 %v625, 0.0
        %v640 = vmax.f32 %v628, 0.0
        %v641 = vmax.f32 %v633, 0.0
        %v642 = vmax.f32 %v636, 0.0
        %v643 = vld [vmem:[#allocation10] sm:$0xf]
        %v644 = vld [vmem:[#allocation10 + $0x4] sm:$0xf]
        %v645 = vld [vmem:[#allocation10 + $0x8] sm:$0xf]
        %v646 = vld [vmem:[#allocation10 + $0xc] sm:$0xf]
        %v647 = vld [vmem:[#allocation10 + $0x10] sm:$0xf]
        %v648 = vld [vmem:[#allocation10 + $0x14] sm:$0xf]
        %v649 = vld [vmem:[#allocation10 + $0x18] sm:$0xf]
        %v650 = vld [vmem:[#allocation10 + $0x1c] sm:$0xf]
        %v651 = vld [vmem:[#allocation10 + $0x20] sm:$0xf]
        %v652 = vld [vmem:[#allocation10 + $0x24] sm:$0xf]
        %v653 = vld [vmem:[#allocation10 + $0x28] sm:$0xf]
        %v654 = vld [vmem:[#allocation10 + $0x2c] sm:$0xf]
        %v655 = vld [vmem:[#allocation10 + $0x30] sm:$0xf]
        %v656 = vld [vmem:[#allocation10 + $0x34] sm:$0xf]
        %v657 = vld [vmem:[#allocation10 + $0x38] sm:$0xf]
        %v658 = vld [vmem:[#allocation10 + $0x3c] sm:$0xf]
        %v659 = vpack.c.bf16 %v640, %v639
        %v660 = vpack.c.bf16 %v642, %v641
        %v661 = vlaneseq
        %v662 = vshrl.u32 %v661, 7
        %v663 = vsub.s32 2, %v662
        %v664 = vrot.slane %v396, %v663
        %v681 = vunpack.c.l.b16 %v643
        %v682 = vunpack.c.l.b16 %v644
        %v683 = vunpack.c.l.b16 %v645
        %v684 = vunpack.c.l.b16 %v646
        %v685 = vunpack.c.l.b16 %v647
        %v686 = vunpack.c.l.b16 %v648
        %v687 = vunpack.c.l.b16 %v649
        %v688 = vunpack.c.l.b16 %v650
        %v689 = vunpack.c.l.b16 %v651
        %v690 = vunpack.c.l.b16 %v652
        %v691 = vunpack.c.l.b16 %v653
        %v692 = vunpack.c.l.b16 %v654
        %v693 = vunpack.c.l.b16 %v655
        %v694 = vunpack.c.l.b16 %v656
        %v695 = vunpack.c.l.b16 %v657
        %v696 = vunpack.c.l.b16 %v658
        %v697 = vpack.c.b16 %v682, %v681
        %v698 = vpack.c.b16 %v684, %v683
        %v699 = vpack.c.b16 %v686, %v685
        %v700 = vpack.c.b16 %v688, %v687
        %v701 = vpack.c.b16 %v690, %v689
        %v702 = vpack.c.b16 %v692, %v691
        %v703 = vpack.c.b16 %v694, %v693
        %v704 = vpack.c.b16 %v696, %v695
        %713 = vmatprep.subr.bf16.mxu0 0
        %714 = vmatpush1.bf16.msra.mxu0 %v697
        %715 = vmatprep.subr.bf16.mxu0 0
        %716 = vmatpush1.bf16.msra.mxu0 %v698
        %717 = vmatprep.subr.bf16.mxu0 0
        %718 = vmatpush1.bf16.msra.mxu0 %v699
        %719 = vmatprep.subr.bf16.mxu0 0
        %720 = vmatpush1.bf16.msra.mxu0 %v700
        %721 = vmatprep.subr.bf16.mxu0 0
        %722 = vmatpush1.bf16.msra.mxu0 %v701
        %723 = vmatprep.subr.bf16.mxu0 0
        %724 = vmatpush1.bf16.msra.mxu0 %v702
        %725 = vmatprep.subr.bf16.mxu0 0
        %726 = vmatpush1.bf16.msra.mxu0 %v703
        %727 = vmatprep.subr.bf16.mxu0 0
        %728 = vmatpush1.bf16.msra.mxu0 %v704
        %729 = vmatprep.subr.bf16.mxu0 0
        %730 = vmatpush1.bf16.msra.mxu0 0
        %731 = vmatprep.subr.bf16.mxu0 0
        %732 = vmatpush1.bf16.msra.mxu0 0
        %733 = vmatprep.subr.bf16.mxu0 0
        %734 = vmatpush1.bf16.msra.mxu0 0
        %735 = vmatprep.subr.bf16.mxu0 0
        %736 = vmatpush1.bf16.msra.mxu0 0
        %737 = vmatprep.subr.bf16.mxu0 0
        %738 = vmatpush1.bf16.msra.mxu0 0
        %739 = vmatprep.subr.bf16.mxu0 0
        %740 = vmatpush1.bf16.msra.mxu0 0
        %741 = vmatprep.subr.bf16.mxu0 0
        %742 = vmatpush1.bf16.msra.mxu0 0
        %743 = vmatprep.subr.bf16.mxu0 0
        %744 = vmatpush1.bf16.msra.mxu0 0
        %745 = vmatprep.mubr.bf16.mxu0 0
        %746 = vmatmul.mubr.bf16.gmra.mrb[0].mxu0 %v659
        %v747 = vpop.f32.mrb[0].mxu0
        %v748 = vadd.f32 %v664, %v747
        %v749 = vpop.f32.mrb[0].mxu0
        %v750 = vpop.f32.mrb[0].mxu0
        %v751 = vadd.f32 %v664, %v750
        %v752 = vpop.f32.mrb[0].mxu0
        %753 = vmatprep.mubr.bf16.mxu0 0
        %754 = vmatmul.mubr.bf16.gmra.mrb[0].mxu0 %v660
        %v755 = vpop.f32.mrb[0].mxu0
        %v756 = vadd.f32 %v664, %v755
        %v757 = vpop.f32.mrb[0].mxu0
        %v758 = vpop.f32.mrb[0].mxu0
        %v759 = vadd.f32 %v664, %v758
        %v760 = vpop.f32.mrb[0].mxu0
        %761 = vdwg.mxu0
        %762 = vmax.xlane.f32.xlu0 %v748
        %v763 = vpop.xlane.xlu0 %762
        %764 = vmax.xlane.f32.xlu0 %v751
        %v765 = vpop.xlane.xlu0 %764
        %766 = vmax.xlane.f32.xlu0 %v756
        %v767 = vpop.xlane.xlu0 %766
        %768 = vmax.xlane.f32.xlu0 %v759
        %v769 = vpop.xlane.xlu0 %768
        %v770 = vsub.f32 %v748, %v763
        %v771 = vsub.f32 %v751, %v765
        %v772 = vsub.f32 %v756, %v767
        %v773 = vsub.f32 %v759, %v769
        %v774 = vmul.f32 %v770, 1.442695
        %v775 = vpow.pop %v774
        %v776 = vmul.f32 %v771, 1.442695
        %v777 = vpow.pop %v776
        %v778 = vmul.f32 %v772, 1.442695
        %v779 = vpow.pop %v778
        %v780 = vmul.f32 %v773, 1.442695
        %v781 = vpow.pop %v780
        %782 = vadd.xlane.f32.xlu0 %v775
        %v783 = vpop.xlane.xlu0 %782
        %784 = vadd.xlane.f32.xlu0 %v777
        %v785 = vpop.xlane.xlu0 %784
        %786 = vadd.xlane.f32.xlu0 %v779
        %v787 = vpop.xlane.xlu0 %786
        %788 = vadd.xlane.f32.xlu0 %v781
        %v789 = vpop.xlane.xlu0 %788
        %v790 = vlog2.pop %v783
        %v791 = vmul.f32 %v790, 0.6931472
        %v792 = vlog2.pop %v785
        %v793 = vmul.f32 %v792, 0.6931472
        %v794 = vlog2.pop %v787
        %v795 = vmul.f32 %v794, 0.6931472
        %v796 = vlog2.pop %v789
        %v797 = vmul.f32 %v796, 0.6931472
        %v798 = vsub.f32 %v770, %v791
        %v799 = vsub.f32 %v771, %v793
        %v800 = vsub.f32 %v772, %v795
        %v801 = vsub.f32 %v773, %v797
        %802 = vst [vmem:[%s350] sm:$0xff] %v798
        %803 = vst [vmem:[%s350 + $0x8] sm:$0xff] %v799
        %804 = vst [vmem:[%s350 + $0x10] sm:$0xff] %v800
        %805 = vst [vmem:[%s350 + $0x18] sm:$0xff] %v801
        %s806 = sand.u32 %s165, 1
        %s807 = scalar_lea.sflag [#allocation4], %s806
        %s808 = sand.u32 %s165, 1
        %s809 = smul.addr %s808, 32
        %s810 = scalar_lea.vmem [#allocation12], %s809
        // Predicated region
        $region65: #{tpu_custom_call.1} parent=43 // pred_check
          %p811 = pneg %p175
        $region66: #{tpu_custom_call.1} parent=43 // pred_check_branch
          %813 = sbr.rel (%p811) target = $region68
        $region67: #{tpu_custom_call.1} parent=43 // pred_region
          %s814 = smul.u32 4, %s26
          %s816 = ssub.s32 512, 512
          %817 = vsyncadd %s807, %s816
          %s818 = smul.addr %s814, 128
          %s819 = scalar_lea.hbm %s6, %s818
          %s820 = sshll.u32 %s810, 4
          %s821 = int_to_ptr.vmem [resolvable:$true] %s820
          %826 = dma.vmem_to_hbm [thread:$0]  %s821, 512, %s819, %s807, 128, 128, 8
        $region68: #{tpu_custom_call.1} parent=43 // pred_fallthru
          _
      $region44: #{tpu_custom_call.1} parent=5 // pred_fallthru
        _
      %p827 = scmp.le.s32.totalorder 2, %s21
      // Predicated region
      $region69: #{tpu_custom_call.1} parent=5 // pred_check
        %p828 = pneg %p827
      $region70: #{tpu_custom_call.1} parent=5 // pred_check_branch
        %830 = sbr.rel (%p828) target = $region72
      $region71: #{tpu_custom_call.1} parent=5 // pred_region
        %s831 = ssub.s32 %s21, 2
        // Predicated region
        $region73: #{tpu_custom_call.1} parent=71 // pred_check
          %p832 = pneg %p181
        $region74: #{tpu_custom_call.1} parent=71 // pred_check_branch
          %834 = sbr.rel (%p832) target = $region76
        $region75: #{tpu_custom_call.1} parent=71 // pred_region
          %s835 = sand.u32 %s166, 1
          %s836 = scalar_lea.sflag [#allocation4], %s835
          %s837 = sand.u32 %s166, 1
          %s838 = smul.addr %s837, 32
          %s839 = scalar_lea.vmem [#allocation12], %s838
          %840 = dma.done %s836, 512
        $region76: #{tpu_custom_call.1} parent=71 // pred_fallthru
          _
      $region72: #{tpu_custom_call.1} parent=5 // pred_fallthru
        _
    $region6: #{tpu_custom_call.1} parent=1 // loop_footer
      %s25 = sadd.s32 1, %s21
    $region7: #{tpu_custom_call.1} parent=1 // loop_footer_branch
      %20 = sbr.rel target = $region3
    $region8: #{tpu_custom_call.1} parent=1 // loop_exit
      _
    %841 = vsyncpa [#allocation3], 1
    %s842 = scalar_lea.sflag [#allocation3], 1
    %843 = vsyncpa %s842, 1
    %844 = vsyncpa [#allocation8], 1
    %845 = vsyncpa [#allocation11], 1
    %846 = vsyncpa [#allocation4], 1
    %s847 = scalar_lea.sflag [#allocation4], 1
    %848 = vsyncpa %s847, 1
    %849 = vsyncpa [#allocation5], 1
    %s850 = scalar_lea.sflag [#allocation5], 1
    %851 = vsyncpa %s850, 1

</llo_original>
